<compile_context>
chip_gen: v7x
topology: tpu7x:2x2x1
jax: 0.10.0
libtpu: 0.0.40
codegen_flags: <defaults>
</compile_context>

<pallas_src>
import jax
import jax.numpy as jnp
from jax.experimental import pallas as pl
from jax.experimental.pallas import tpu as pltpu

G = 0.8           # same `g` as the PyTorch script
EPS = 1e-12       # F.normalize default eps


def _round_up(x, m):
    return ((x + m - 1) // m) * m


def _simplex_kernel(a_ref, b_ref, wt_ref, o_ref):
    # y = b @ V^T.  wt_ref already holds V^T (pre-transposed in the wrapper),
    # so this is a plain (1)x(0) contraction: bf16 operands, f32 accumulation
    # on the MXU.
    y = jnp.dot(b_ref[...], wt_ref[...], preferred_element_type=jnp.float32)

    # z = g * a + (1 - g) * y  -- element-wise blend in f32 (VPU).
    z = G * a_ref[...].astype(jnp.float32) + (1.0 - G) * y

    # Row-wise L2 normalize: z * rsqrt(max(||z||^2, eps^2)) == z / max(||z||, eps),
    # exactly F.normalize semantics.  rsqrt goes to the EUP.
    ss = jnp.sum(z * z, axis=-1, keepdims=True)
    inv = jax.lax.rsqrt(jnp.maximum(ss, EPS * EPS))
    o_ref[...] = (z * inv).astype(o_ref.dtype)


def user_module_forward(a, b, v_weight, *, block_b=4096, out_dtype=jnp.float32):
    """a, b: [B, D] (f32 or bf16); v_weight: [D, D] torch Linear weight (y = x @ W^T)."""
    B, D = a.shape

    # One-time 64 KiB transpose + cast of the weight so the kernel body never
    # transposes; cast to the streamed dtype so the MXU sees matching operands.
    w_t = jnp.asarray(v_weight).T.astype(b.dtype)

    out_itemsize = jnp.dtype(out_dtype).itemsize
    cost = pl.CostEstimate(
        flops=2 * B * D * D,
        transcendentals=B,
        bytes_accessed=(B * D * (a.dtype.itemsize + b.dtype.itemsize + out_itemsize)
                        + D * D * w_t.dtype.itemsize),
    )

    if B <= block_b:
        # Small problem: no grid, no pipeline scaffolding -- everything in VMEM.
        return pl.pallas_call(
            _simplex_kernel,
            out_shape=jax.ShapeDtypeStruct((B, D), out_dtype),
            in_specs=[
                pl.BlockSpec(memory_space=pltpu.MemorySpace.VMEM),
                pl.BlockSpec(memory_space=pltpu.MemorySpace.VMEM),
                pl.BlockSpec(memory_space=pltpu.MemorySpace.VMEM),
            ],
            out_specs=pl.BlockSpec(memory_space=pltpu.MemorySpace.VMEM),
            cost_estimate=cost,
        )(a, b, w_t)

    # Serving-scale batch: tile the batch axis, keep the [D, D] weight resident.
    # Clamp the tile so the grid has >= 2 steps (v7x: both TCs get work);
    # keep it a multiple of 8 to satisfy the (8, 128) tiling constraint.
    eff = min(block_b, _round_up(pl.cdiv(B, 2), 8))
    grid = (pl.cdiv(B, eff),)

    # 2x double-buffered streams + resident weight; raise the scoped-VMEM limit
    # only when a caller pushes past v5e's 16 MiB default.
    vmem_bytes = (2 * eff * D * (a.dtype.itemsize + b.dtype.itemsize + out_itemsize)
                  + D * D * w_t.dtype.itemsize)
    cparams = {"dimension_semantics": ("parallel",)}
    if vmem_bytes + (2 << 20) > (16 << 20):
        cparams["vmem_limit_bytes"] = int(vmem_bytes + (4 << 20))

    return pl.pallas_call(
        _simplex_kernel,
        out_shape=jax.ShapeDtypeStruct((B, D), out_dtype),
        grid=grid,
        in_specs=[
            pl.BlockSpec((eff, D), lambda i: (i, 0)),
            pl.BlockSpec((eff, D), lambda i: (i, 0)),
            pl.BlockSpec((D, D), lambda i: (0, 0)),   # resident across the grid
        ],
        out_specs=pl.BlockSpec((eff, D), lambda i: (i, 0)),
        compiler_params=pltpu.CompilerParams(**cparams),
        cost_estimate=cost,
    )(a, b, w_t)


if __name__ == "__main__":
    # Shapes implied by the module: emb_size = 32, feature_count = 4
    #   -> emb_out_size = 128;  small demo batch = 8.
    batch = 8
    emb_size = 32
    feature_count = 4
    emb_out_size = feature_count * emb_size  # 128

    key = jax.random.PRNGKey(0)
    k_a, k_b, k_w = jax.random.split(key, 3)

    # Stand-ins for the sparse EmbeddingSumConcat outputs
    # (NormalTensorInitializer(var=0.0001) -> std = 0.01); embedding outputs
    # are assumed to be stored/streamed in bf16 at serving time.
    # TODO(synk): ms.EmbeddingSumConcat sparse lookup has no Pallas equivalent;
    #             dense embedding outputs are synthesized here.
    a_f32 = 0.01 * jax.random.normal(k_a, (batch, emb_out_size), dtype=jnp.float32)
    b_f32 = 0.01 * jax.random.normal(k_b, (batch, emb_out_size), dtype=jnp.float32)
    a = a_f32.astype(jnp.bfloat16)
    b = b_f32.astype(jnp.bfloat16)

    # SimpleXDense._v weight: xavier_uniform_ on a [D, D] Linear weight.
    bound = (6.0 / (emb_out_size + emb_out_size)) ** 0.5
    v_weight = jax.random.uniform(
        k_w, (emb_out_size, emb_out_size), dtype=jnp.float32,
        minval=-bound, maxval=bound)

    out = user_module_forward(a, b, v_weight)
    out = jax.block_until_ready(out)
    assert out.shape == (batch, emb_out_size)

    # Rows must be unit-norm (f32 normalize inside the kernel).
    assert bool(jnp.all(jnp.abs(jnp.linalg.norm(out, axis=1) - 1.0) < 1e-3))

    # Tight check: pure-JAX reference on the SAME bf16-quantized operands
    # (isolates kernel error from storage quantization).
    a32 = a.astype(jnp.float32)
    b32 = b.astype(jnp.float32)
    w32 = v_weight.astype(jnp.bfloat16).astype(jnp.float32)
    z_q = G * a32 + (1.0 - G) * (b32 @ w32.T)
    ref_q = z_q / jnp.maximum(jnp.linalg.norm(z_q, axis=1, keepdims=True), EPS)
    assert bool(jnp.allclose(out, ref_q, atol=1e-4, rtol=1e-4))

    # Loose check: full-f32 reference (bounds the bf16 storage quantization).
    z_f = G * a_f32 + (1.0 - G) * (b_f32 @ v_weight.T)
    ref_f = z_f / jnp.maximum(jnp.linalg.norm(z_f, axis=1, keepdims=True), EPS)
    assert bool(jnp.allclose(out, ref_f, atol=5e-3, rtol=0.0))

    print("KERNEL_OK")
</pallas_src>

<mosaic_0001>
module attributes {stable_mosaic.version = 11 : i64} {
  func.func @_simplex_kernel(%arg0: memref<8x128xbf16, #tpu.memory_space<vmem>>, %arg1: memref<8x128xbf16, #tpu.memory_space<vmem>>, %arg2: memref<128x128xbf16, #tpu.memory_space<vmem>>, %arg3: memref<8x128xf32, #tpu.memory_space<vmem>>) attributes {dimension_semantics = [], scalar_prefetch = 0 : i64, scratch_operands = 0 : i64, tpu.core_type = #tpu.core_type<tc>} {
    %c0 = arith.constant 0 : index
    %c0_0 = arith.constant 0 : index
    %0 = vector.load %arg1[%c0, %c0_0] : memref<8x128xbf16, #tpu.memory_space<vmem>>, vector<8x128xbf16>
    %c0_1 = arith.constant 0 : index
    %c0_2 = arith.constant 0 : index
    %1 = vector.load %arg2[%c0_1, %c0_2] : memref<128x128xbf16, #tpu.memory_space<vmem>>, vector<128x128xbf16>
    %cst = arith.constant dense<0.000000e+00> : vector<8x128xf32>
    %2 = tpu.matmul %0, %1, %cst {dimension_numbers = #tpu.dot_dimension_numbers<[1], [0], [0], [1], [0, 0, 1, 1], [], []>} : vector<8x128xbf16>, vector<128x128xbf16>, vector<8x128xf32> -> vector<8x128xf32>
    %c0_3 = arith.constant 0 : index
    %c0_4 = arith.constant 0 : index
    %3 = vector.load %arg0[%c0_3, %c0_4] : memref<8x128xbf16, #tpu.memory_space<vmem>>, vector<8x128xbf16>
    %4 = arith.extf %3 : vector<8x128xbf16> to vector<8x128xf32>
    %cst_5 = arith.constant 8.000000e-01 : f32
    %5 = vector.broadcast %cst_5 : f32 to vector<8x128xf32>
    %6 = arith.mulf %5, %4 : vector<8x128xf32>
    %cst_6 = arith.constant 2.000000e-01 : f32
    %7 = vector.broadcast %cst_6 : f32 to vector<8x128xf32>
    %8 = arith.mulf %7, %2 : vector<8x128xf32>
    %9 = arith.addf %6, %8 : vector<8x128xf32>
    %10 = arith.mulf %9, %9 : vector<8x128xf32>
    %cst_7 = arith.constant dense<0.000000e+00> : vector<8xf32>
    %11 = vector.multi_reduction <add>, %10, %cst_7 [1] : vector<8x128xf32> to vector<8xf32>
    %12 = vector.shape_cast %11 : vector<8xf32> to vector<8x1xf32>
    %cst_8 = arith.constant 1.000000e-24 : f32
    %13 = vector.broadcast %cst_8 : f32 to vector<8x1xf32>
    %14 = arith.maximumf %12, %13 : vector<8x1xf32>
    %15 = math.rsqrt %14 : vector<8x1xf32>
    %16 = vector.broadcast %15 : vector<8x1xf32> to vector<8x128xf32>
    %17 = arith.mulf %9, %16 : vector<8x128xf32>
    %c0_9 = arith.constant 0 : index
    %c0_10 = arith.constant 0 : index
    %18 = vector.load %arg3[%c0_9, %c0_10] : memref<8x128xf32, #tpu.memory_space<vmem>>, vector<8x128xf32>
    tpu.vector_store %arg3[%c0_9, %c0_10], %17 {strides = array<i32>} : memref<8x128xf32, #tpu.memory_space<vmem>>, vector<8x128xf32>,
    return
  }
}

</mosaic_0001>

<llo_original>
// kernel: tpu_custom_call.1
$region0: #{tpu_custom_call.1}
  #allocation0 [shape = 'u32[]', space=smem, size = 0x4, offset = 0x4, fixed_abs, tag = 'smem constant byte address 0x4 - core index']
  #allocation1 [shape = 'u32[144,128]{1,0:T(1,128)}', space=vmem, size = 0x12000, scoped, tag = 'internal scratch']
  %s0 = inlined_call_operand.hbm [shape: bf16[8,128], index: 0, kind: input, shape index: {}]
  %s1 = inlined_call_operand.hbm [shape: bf16[8,128], index: 1, kind: input, shape index: {}]
  %s2 = inlined_call_operand.hbm [shape: bf16[128,128], index: 2, kind: input, shape index: {}]
  %s3 = inlined_call_operand.hbm [shape: f32[8,128], index: 3, kind: output, shape index: {}]
  %s4 = sld [smem:[#allocation0]]
  $region34: #{tpu_custom_call.1} parent=0
    _
  %s6 = ssub.s32 1, %s4
  %s7 = scalar_select 0, %s6, %s4
  $region1: #{tpu_custom_call.1} parent=0
    #allocation2 [shape = 'u8[2048]{0}', space=vmem, size = 0x800, scoped, tag = 'input window, operand 0, single buffered']
    #allocation3 [shape = 's32[1]{0}', space=sflag, size = 0x4, scoped, tag = 'scoped memory for tpu_custom_call.1']
    #allocation4 [shape = 's32[1]{0}', space=sflag, size = 0x4, scoped, tag = 'scoped memory for tpu_custom_call.1']
    #allocation5 [shape = 'u8[2048]{0}', space=vmem, size = 0x800, scoped, tag = 'input window, operand 1, single buffered']
    #allocation6 [shape = 's32[1]{0}', space=sflag, size = 0x4, scoped, tag = 'scoped memory for tpu_custom_call.1']
    #allocation7 [shape = 'u8[32768]{0}', space=vmem, size = 0x8000, scoped, tag = 'input window, operand 2, single buffered']
    #allocation8 [shape = 'u8[4096]{0}', space=vmem, size = 0x1000, scoped, tag = 'output window, operand 0, single buffered']
    %8 = vsyncpa [#allocation3], 0
    %9 = vsyncpa [#allocation6], 0
    %10 = vsyncpa [#allocation4], 0
    // Predicated region
    $region2: #{tpu_custom_call.1} parent=1 // pred_check
      _
    $region3: #{tpu_custom_call.1} parent=1 // pred_check_branch
      %12 = sbr.rel (0) target = $region5
    $region4: #{tpu_custom_call.1} parent=1 // pred_region
      %s14 = ssub.s32 64, 64
      %15 = vsyncadd [#allocation3], %s14
      %s17 = sshll.u32 [#allocation2], 4
      %s18 = int_to_ptr.vmem [resolvable:$true] %s17
      %20 = dma.hbm_to_vmem [thread:$0]  %s0, 64, %s18, [#allocation3]
    $region5: #{tpu_custom_call.1} parent=1 // pred_fallthru
      _
    // Predicated region
    $region6: #{tpu_custom_call.1} parent=1 // pred_check
      _
    $region7: #{tpu_custom_call.1} parent=1 // pred_check_branch
      %22 = sbr.rel (0) target = $region9
    $region8: #{tpu_custom_call.1} parent=1 // pred_region
      %s24 = ssub.s32 64, 64
      %25 = vsyncadd [#allocation6], %s24
      %s27 = sshll.u32 [#allocation5], 4
      %s28 = int_to_ptr.vmem [resolvable:$true] %s27
      %30 = dma.hbm_to_vmem [thread:$0]  %s1, 64, %s28, [#allocation6]
    $region9: #{tpu_custom_call.1} parent=1 // pred_fallthru
      _
    // Predicated region
    $region10: #{tpu_custom_call.1} parent=1 // pred_check
      _
    $region11: #{tpu_custom_call.1} parent=1 // pred_check_branch
      %32 = sbr.rel (0) target = $region13
    $region12: #{tpu_custom_call.1} parent=1 // pred_region
      %s34 = ssub.s32 1024, 1024
      %35 = vsyncadd [#allocation6], %s34
      %s36 = sshll.u32 [#allocation7], 4
      %s37 = int_to_ptr.vmem [resolvable:$true] %s36
      %42 = dma.hbm_to_vmem [thread:$0]  %s2, 1024, %s37, [#allocation6], 64, 64, 4
    $region13: #{tpu_custom_call.1} parent=1 // pred_fallthru
      _
    // Predicated region
    $region14: #{tpu_custom_call.1} parent=1 // pred_check
      _
    $region15: #{tpu_custom_call.1} parent=1 // pred_check_branch
      %44 = sbr.rel (0) target = $region17
    $region16: #{tpu_custom_call.1} parent=1 // pred_region
      %45 = dma.done [#allocation3], 64
    $region17: #{tpu_custom_call.1} parent=1 // pred_fallthru
      _
    // Predicated region
    $region18: #{tpu_custom_call.1} parent=1 // pred_check
      _
    $region19: #{tpu_custom_call.1} parent=1 // pred_check_branch
      %47 = sbr.rel (0) target = $region21
    $region20: #{tpu_custom_call.1} parent=1 // pred_region
      %48 = dma.done [#allocation6], 64
    $region21: #{tpu_custom_call.1} parent=1 // pred_fallthru
      _
    // Predicated region
    $region22: #{tpu_custom_call.1} parent=1 // pred_check
      _
    $region23: #{tpu_custom_call.1} parent=1 // pred_check_branch
      %50 = sbr.rel (0) target = $region25
    $region24: #{tpu_custom_call.1} parent=1 // pred_region
      %51 = dma.done [#allocation6], 1024
    $region25: #{tpu_custom_call.1} parent=1 // pred_fallthru
      _
    %v53 = vld [vmem:[#allocation5] sm:$0xf]
    %v54 = vld [vmem:[#allocation7] sm:$0xf]
    %v55 = vld [vmem:[#allocation7 + $0x4] sm:$0xf]
    %v56 = vld [vmem:[#allocation7 + $0x8] sm:$0xf]
    %v57 = vld [vmem:[#allocation7 + $0xc] sm:$0xf]
    %v58 = vld [vmem:[#allocation7 + $0x10] sm:$0xf]
    %v59 = vld [vmem:[#allocation7 + $0x14] sm:$0xf]
    %v60 = vld [vmem:[#allocation7 + $0x18] sm:$0xf]
    %v61 = vld [vmem:[#allocation7 + $0x1c] sm:$0xf]
    %v62 = vld [vmem:[#allocation7 + $0x20] sm:$0xf]
    %v63 = vld [vmem:[#allocation7 + $0x24] sm:$0xf]
    %v64 = vld [vmem:[#allocation7 + $0x28] sm:$0xf]
    %v65 = vld [vmem:[#allocation7 + $0x2c] sm:$0xf]
    %v66 = vld [vmem:[#allocation7 + $0x30] sm:$0xf]
    %v67 = vld [vmem:[#allocation7 + $0x34] sm:$0xf]
    %v68 = vld [vmem:[#allocation7 + $0x38] sm:$0xf]
    %v69 = vld [vmem:[#allocation7 + $0x3c] sm:$0xf]
    %v86 = vunpack.c.l.b16 %v54
    %v87 = vunpack.c.l.b16 %v55
    %v88 = vunpack.c.l.b16 %v56
    %v89 = vunpack.c.l.b16 %v57
    %v90 = vunpack.c.l.b16 %v58
    %v91 = vunpack.c.l.b16 %v59
    %v92 = vunpack.c.l.b16 %v60
    %v93 = vunpack.c.l.b16 %v61
    %v94 = vunpack.c.l.b16 %v62
    %v95 = vunpack.c.l.b16 %v63
    %v96 = vunpack.c.l.b16 %v64
    %v97 = vunpack.c.l.b16 %v65
    %v98 = vunpack.c.l.b16 %v66
    %v99 = vunpack.c.l.b16 %v67
    %v100 = vunpack.c.l.b16 %v68
    %v101 = vunpack.c.l.b16 %v69
    %v102 = vpack.c.b16 %v87, %v86
    %v103 = vpack.c.b16 %v89, %v88
    %v104 = vpack.c.b16 %v91, %v90
    %v105 = vpack.c.b16 %v93, %v92
    %v106 = vpack.c.b16 %v95, %v94
    %v107 = vpack.c.b16 %v97, %v96
    %v108 = vpack.c.b16 %v99, %v98
    %v109 = vpack.c.b16 %v101, %v100
    %118 = vmatprep.subr.bf16.mxu0 0
    %119 = vmatpush1.bf16.msra.mxu0 %v102
    %120 = vmatprep.subr.bf16.mxu0 0
    %121 = vmatpush1.bf16.msra.mxu0 %v103
    %122 = vmatprep.subr.bf16.mxu0 0
    %123 = vmatpush1.bf16.msra.mxu0 %v104
    %124 = vmatprep.subr.bf16.mxu0 0
    %125 = vmatpush1.bf16.msra.mxu0 %v105
    %126 = vmatprep.subr.bf16.mxu0 0
    %127 = vmatpush1.bf16.msra.mxu0 %v106
    %128 = vmatprep.subr.bf16.mxu0 0
    %129 = vmatpush1.bf16.msra.mxu0 %v107
    %130 = vmatprep.subr.bf16.mxu0 0
    %131 = vmatpush1.bf16.msra.mxu0 %v108
    %132 = vmatprep.subr.bf16.mxu0 0
    %133 = vmatpush1.bf16.msra.mxu0 %v109
    %134 = vmatprep.subr.bf16.mxu0 0
    %135 = vmatpush1.bf16.msra.mxu0 0
    %136 = vmatprep.subr.bf16.mxu0 0
    %137 = vmatpush1.bf16.msra.mxu0 0
    %138 = vmatprep.subr.bf16.mxu0 0
    %139 = vmatpush1.bf16.msra.mxu0 0
    %140 = vmatprep.subr.bf16.mxu0 0
    %141 = vmatpush1.bf16.msra.mxu0 0
    %142 = vmatprep.subr.bf16.mxu0 0
    %143 = vmatpush1.bf16.msra.mxu0 0
    %144 = vmatprep.subr.bf16.mxu0 0
    %145 = vmatpush1.bf16.msra.mxu0 0
    %146 = vmatprep.subr.bf16.mxu0 0
    %147 = vmatpush1.bf16.msra.mxu0 0
    %148 = vmatprep.subr.bf16.mxu0 0
    %149 = vmatpush1.bf16.msra.mxu0 0
    %150 = vmatprep.mubr.bf16.mxu0 0
    %151 = vmatmul.mubr.bf16.gmra.mrb[0].mxu0 %v53
    %v152 = vpop.f32.mrb[0].mxu0
    %v153 = vadd.f32 0.0, %v152
    %v154 = vpop.f32.mrb[0].mxu0
    %v155 = vpop.f32.mrb[0].mxu0
    %v156 = vpop.f32.mrb[0].mxu0
    %157 = vdwg.mxu0
    %v158 = vld [vmem:[#allocation2] sm:$0xf]
    %v159 = vunpack.c.l.bf16 %v158
    %v160 = vmul.f32 %v159, 0.8
    %v161 = vmul.f32 %v153, 0.2
    %v162 = vadd.f32 %v160, %v161
    %v163 = vmul.f32 %v162, %v162
    %164 = vadd.xlane.f32.xlu0 %v163
    %v165 = vpop.xlane.xlu0 %164
    %v166 = vmax.f32 %v165, 1e-24
    %v167 = vrsqrt.pop %v166
    %v168 = vmul.f32 %v162, %v167
    %169 = vst [vmem:[#allocation8] sm:$0xff] %v168
    // Predicated region
    $region26: #{tpu_custom_call.1} parent=1 // pred_check
      _
    $region27: #{tpu_custom_call.1} parent=1 // pred_check_branch
      %171 = sbr.rel (0) target = $region29
    $region28: #{tpu_custom_call.1} parent=1 // pred_region
      %s173 = ssub.s32 128, 128
      %174 = vsyncadd [#allocation4], %s173
      %s176 = sshll.u32 [#allocation8], 4
      %s177 = int_to_ptr.vmem [resolvable:$true] %s176
      %179 = dma.vmem_to_hbm [thread:$0]  %s177, 128, %s3, [#allocation4]
    $region29: #{tpu_custom_call.1} parent=1 // pred_fallthru
      _
    // Predicated region
    $region30: #{tpu_custom_call.1} parent=1 // pred_check
      _
    $region31: #{tpu_custom_call.1} parent=1 // pred_check_branch
      %181 = sbr.rel (0) target = $region33
    $region32: #{tpu_custom_call.1} parent=1 // pred_region
      %182 = dma.done [#allocation4], 128
    $region33: #{tpu_custom_call.1} parent=1 // pred_fallthru
      _
    %183 = vsyncpa [#allocation3], 1
    %184 = vsyncpa [#allocation6], 1
    %185 = vsyncpa [#allocation4], 1

</llo_original>
